<compile_context>
chip_gen: v5e
topology: v5e:2x2
jax: 0.10.0
libtpu: 0.0.40
codegen_flags: <defaults>
</compile_context>

<pallas_src>
import functools
import math

import jax
import jax.numpy as jnp
import numpy as np
from jax.experimental import pallas as pl
from jax.experimental.pallas import tpu as pltpu


def _sublane_sum(p):
    """Sum over sublanes; fold halves on the VPU first to halve XLU reduce depth."""
    rows = p.shape[0]
    while rows > 8 and rows % 2 == 0:
        half = rows // 2
        p = p[:half, :] + p[half:, :]
        rows = half
    return jnp.sum(p, axis=0, keepdims=True)


def _norm_kernel(astk_ref, out_ref):
    """Batch-invariant normalization: logdet(A A^T + I), run once (no grid).

    astk_ref is the stacked bf16 hi/lo split of A^T, shape (2C, C).  The
    recombined Gram (hi+lo)(hi+lo)^T equals A^T A to ~2^-17 relative accuracy,
    and logdet(A^T A + I) == logdet(A A^T + I) for square A (same singular
    values).  Pivot-free elimination is valid because the matrix is SPD."""
    Astk = astk_ref[...]                              # (2C, C) bf16
    C = Astk.shape[0] // 2
    W = jax.lax.dot_general(Astk, Astk, (((1,), (1,)), ((), ())),
                            preferred_element_type=jnp.float32)   # (2C, 2C)
    L = W[:C, :C] + W[:C, C:] + W[C:, :C] + W[C:, C:]             # (hi+lo)(hi+lo)^T
    ri = jax.lax.broadcasted_iota(jnp.int32, (C, C), 0)
    ci = jax.lax.broadcasted_iota(jnp.int32, (C, C), 1)
    M = L + (ri == ci).astype(jnp.float32)            # L + I

    # TODO(synk): for large C (>~64) switch this unrolled rank-1 elimination to
    # a lax.fori_loop / blocked MXU Cholesky to bound code size & VPU work.
    acc = jnp.zeros((1, 1), jnp.float32)
    for i in range(C):                                # static unroll, one-shot kernel
        piv = M[i:i + 1, i:i + 1]                     # (1, 1)
        acc = acc + jnp.log(piv)
        col = M[:, i:i + 1]                           # (C, 1)
        row = M[i:i + 1, :]                           # (1, C)
        upd = (col / piv) * row                       # rank-1 elimination update
        M = M - jnp.where(ri > i, upd, 0.0)
    out_ref[...] = acc


def _dpp_tile_kernel(astk_ref, x_ref, out_ref, m_ref, *, cb):
    """One grid step = TB batch rows, chunked into cb(=128)-lane pieces.

    astk_ref: (2C, C) bf16  = [hi; lo] split of A^T (hoisted, batch-invariant)
    x_ref:    (1, k, TB) int32, x_ref[0, i, b] = class index of item i of row b
    out_ref:  (1, 1, TB) f32, lane-dense per-row logdet(L_x)
    m_ref:    (2*k*(k+1)/2, 1, cb) f32 VMEM scratch, double-buffered Gram rows
    """
    Astk = astk_ref[...]                              # (2C, C) bf16
    C = Astk.shape[0] // 2
    xk = x_ref[0]                                     # (k, TB) int32
    k, TB = xk.shape
    n_chunks = TB // cb
    KK = k * (k + 1) // 2

    # Packed row index of the upper-triangular Gram entries.
    ridx = {}
    nxt = 0
    for i in range(k):
        for j in range(i, k):
            ridx[(i, j)] = nxt
            nxt += 1

    cls = jax.lax.broadcasted_iota(jnp.int32, (C, cb), 0)   # hoisted (2 vregs)

    accs = []
    for c in range(n_chunks):                         # static unroll (tile_b/128, small)
        base = KK * (c % 2)                           # double-buffered scratch slot
        x_c = xk[:, c * cb:(c + 1) * cb]              # (k, cb)

        # Fused one-hot gather: E[:, i*cb + b] is the one-hot of x[b, i]; a
        # single bf16 MXU matmul gathers all k selected rows of A for all cb
        # rows.  Concatenation is at 128-lane boundaries (no relayout).
        E = jnp.concatenate(
            [(cls == x_c[i:i + 1, :]).astype(jnp.bfloat16) for i in range(k)],
            axis=1)                                   # (C, k*cb) bf16
        G2 = jnp.dot(Astk, E, preferred_element_type=jnp.float32)   # (2C, k*cb)
        G = G2[:C, :] + G2[C:, :]                     # hi+lo -> ~f32-exact A[x, :]
        Gi = [G[:, i * cb:(i + 1) * cb] for i in range(k)]   # 128-lane views

        # Upper-triangular Gram entries M[(i,j)][b] = L[x[b,i], x[b,j]], staged
        # in VMEM scratch to bound vreg live ranges.  (torch.masked_select
        # orders the same submatrix by sorted index -> symmetric permutation,
        # logdet invariant.)
        for i in range(k):
            for j in range(i, k):
                m_ref[base + ridx[(i, j)]] = _sublane_sum(Gi[i] * Gi[j])

        # Batched pivot-free symmetric elimination over the cb lanes
        # (valid: L_x is SPD for distinct indices).
        pivots = []
        for i in range(k):
            piv = m_ref[base + ridx[(i, i)]]          # (1, cb)
            pivots.append(piv)
            rcp = pl.reciprocal(piv, approx=True)     # EUP slot
            inv = rcp * (2.0 - piv * rcp)             # one Newton step -> ~f32 exact
            row_i = [m_ref[base + ridx[(i, b)]] for b in range(i + 1, k)]
            for a in range(i + 1, k):
                f = row_i[a - i - 1] * inv
                for b in range(a, k):
                    m_ref[base + ridx[(a, b)]] = (
                        m_ref[base + ridx[(a, b)]] - f * row_i[b - i - 1])

        # logdet = sum_i log(pivot_i); pair pivots to halve EUP log count.
        acc = jnp.zeros((1, cb), jnp.float32)
        i = 0
        while i + 1 < k:
            acc = acc + jnp.log(pivots[i] * pivots[i + 1])
            i += 2
        if i < k:
            acc = acc + jnp.log(pivots[i])
        accs.append(acc)

    res = accs[0] if n_chunks == 1 else jnp.concatenate(accs, axis=1)
    out_ref[0] = res                                  # (1, TB) lane-dense store


def dpp_forward(x, l_chol, *, tile_b=512):
    """x: (bsz, k) int with k distinct class indices per row.
       l_chol: (C, C) float parameter (_L_chol).  Returns (bsz,) f32."""
    bsz, k = x.shape
    C = l_chol.shape[0]
    a_f32 = l_chol.astype(jnp.float32)

    # Hoisted, batch-invariant: bf16 hi/lo split of A^T stacked to (2C, C).
    at = a_f32.T
    a_hi = at.astype(jnp.bfloat16)
    a_lo = (at - a_hi.astype(jnp.float32)).astype(jnp.bfloat16)
    a_stk = jnp.concatenate([a_hi, a_lo], axis=0)     # (2C, C) bf16

    # Normalization logdet: batch-invariant, computed exactly once.
    norm = pl.pallas_call(
        _norm_kernel,
        out_shape=jax.ShapeDtypeStruct((1, 1), jnp.float32),
    )(a_stk)

    CB = 128
    n_chunks_total = -(-bsz // CB)                    # cdiv
    cpt = max(1, min(int(tile_b) // CB, n_chunks_total))   # chunks per tile
    if n_chunks_total >= 2:
        # v7x: keep >= 2 tiles so the "parallel" axis splits across both TCs.
        cpt = min(cpt, -(-n_chunks_total // 2))
    TB = cpt * CB
    n_tiles = -(-n_chunks_total // cpt)
    bsz_pad = n_tiles * TB

    x = x.astype(jnp.int32)
    if bsz_pad != bsz:
        # Padded rows use distinct dummy indices (finite logdet, discarded
        # afterwards).  Note: assumes k <= C, as the module semantics require.
        pad_rows = jnp.broadcast_to(
            (jnp.arange(k, dtype=jnp.int32) % C)[None, :], (bsz_pad - bsz, k))
        x_pad = jnp.concatenate([x, pad_rows], axis=0)
    else:
        x_pad = x

    # Per-tile, index-major layout: xt[t, i, b] = x[t*TB + b, i]
    # (batch on the lane axis inside the kernel; only k*TB int32 per step).
    xt = x_pad.reshape(n_tiles, TB, k).transpose(0, 2, 1)

    KK = k * (k + 1) // 2
    out = pl.pallas_call(
        functools.partial(_dpp_tile_kernel, cb=CB),
        out_shape=jax.ShapeDtypeStruct((n_tiles, 1, TB), jnp.float32),
        grid=(n_tiles,),
        in_specs=[
            pl.BlockSpec((2 * C, C), lambda t: (0, 0)),       # A^T hi/lo split
            pl.BlockSpec((1, k, TB), lambda t: (t, 0, 0)),    # indices for this tile
        ],
        out_specs=pl.BlockSpec((1, 1, TB), lambda t: (t, 0, 0)),
        scratch_shapes=[pltpu.VMEM((2 * KK, 1, CB), jnp.float32)],
        compiler_params=pltpu.CompilerParams(
            dimension_semantics=("parallel",)),               # independent tiles
    )(a_stk, xt)

    # Batch-invariant normalization subtracted in the wrapper (cheap, removes a
    # per-step input stream from the kernel).
    return out.reshape(-1)[:bsz] - norm[0, 0]


def _reference(x, l_chol):
    C = l_chol.shape[0]
    L = jnp.matmul(l_chol, l_chol.T, precision=jax.lax.Precision.HIGHEST)
    L_x = L[x[:, :, None], x[:, None, :]]
    _, loglik = jnp.linalg.slogdet(L_x)
    _, norm = jnp.linalg.slogdet(L + jnp.eye(C, dtype=L.dtype))
    return loglik - norm


if __name__ == "__main__":
    num_classes = 16
    bsz, k = 300, 8

    root = jax.random.PRNGKey(0)
    k_param, k_x = jax.random.split(root)

    # Deterministic parameter init, same recipe as the module: randn(C,C)/sqrt(C).
    l_chol = (jax.random.normal(k_param, (num_classes, num_classes),
                                dtype=jnp.float32)
              / math.sqrt(num_classes))

    # Each row needs k *distinct* class indices (the PyTorch masked_select
    # reshape assumes this): take the first k of a random permutation per row.
    u = jax.random.uniform(k_x, (bsz, num_classes))
    x = jnp.argsort(u, axis=1)[:, :k].astype(jnp.int32)

    # tile_b=256 exercises multi-tile grid, in-kernel chunking and batch padding.
    out = dpp_forward(x, l_chol, tile_b=256)
    out = jax.block_until_ready(out)

    ref = _reference(x, l_chol)
    np.testing.assert_allclose(np.asarray(out), np.asarray(ref),
                               rtol=2e-2, atol=2e-2)

    print("KERNEL_OK")
</pallas_src>

<mosaic_0001>
module attributes {stable_mosaic.version = 11 : i64} {
  func.func @_norm_kernel(%arg0: memref<32x16xbf16, #tpu.memory_space<vmem>>, %arg1: memref<1x1xf32, #tpu.memory_space<vmem>>) attributes {dimension_semantics = [], scalar_prefetch = 0 : i64, scratch_operands = 0 : i64, tpu.core_type = #tpu.core_type<tc>} {
    %c0 = arith.constant 0 : index
    %c0_0 = arith.constant 0 : index
    %0 = vector.load %arg0[%c0, %c0_0] : memref<32x16xbf16, #tpu.memory_space<vmem>>, vector<32x16xbf16>
    %cst = arith.constant dense<0.000000e+00> : vector<32x32xf32>
    %1 = tpu.matmul %0, %0, %cst {dimension_numbers = #tpu.dot_dimension_numbers<[1], [1], [0], [0], [0, 0, 1, 0], [], []>} : vector<32x16xbf16>, vector<32x16xbf16>, vector<32x32xf32> -> vector<32x32xf32>
    %2 = vector.extract_strided_slice %1 {offsets = [0, 0], sizes = [16, 16], strides = [1, 1]} : vector<32x32xf32> to vector<16x16xf32>
    %3 = vector.extract_strided_slice %1 {offsets = [0, 16], sizes = [16, 16], strides = [1, 1]} : vector<32x32xf32> to vector<16x16xf32>
    %4 = arith.addf %2, %3 : vector<16x16xf32>
    %5 = vector.extract_strided_slice %1 {offsets = [16, 0], sizes = [16, 16], strides = [1, 1]} : vector<32x32xf32> to vector<16x16xf32>
    %6 = arith.addf %4, %5 : vector<16x16xf32>
    %7 = vector.extract_strided_slice %1 {offsets = [16, 16], sizes = [16, 16], strides = [1, 1]} : vector<32x32xf32> to vector<16x16xf32>
    %8 = arith.addf %6, %7 : vector<16x16xf32>
    %9 = tpu.iota {dimensions = array<i32: 0>} : vector<16x16xi32>
    %10 = tpu.iota {dimensions = array<i32: 1>} : vector<16x16xi32>
    %11 = arith.cmpi eq, %9, %10 : vector<16x16xi32>
    %12 = arith.extui %11 : vector<16x16xi1> to vector<16x16xi32>
    %13 = arith.sitofp %12 : vector<16x16xi32> to vector<16x16xf32>
    %14 = arith.addf %8, %13 : vector<16x16xf32>
    %cst_1 = arith.constant 0.000000e+00 : f32
    %15 = vector.broadcast %cst_1 : f32 to vector<1x1xf32>
    %16 = vector.extract_strided_slice %14 {offsets = [0, 0], sizes = [1, 1], strides = [1, 1]} : vector<16x16xf32> to vector<1x1xf32>
    %17 = math.log %16 : vector<1x1xf32>
    %18 = arith.addf %15, %17 : vector<1x1xf32>
    %19 = vector.extract_strided_slice %14 {offsets = [0, 0], sizes = [16, 1], strides = [1, 1]} : vector<16x16xf32> to vector<16x1xf32>
    %20 = vector.extract_strided_slice %14 {offsets = [0, 0], sizes = [1, 16], strides = [1, 1]} : vector<16x16xf32> to vector<1x16xf32>
    %21 = vector.broadcast %16 : vector<1x1xf32> to vector<16x1xf32>
    %22 = arith.divf %19, %21 : vector<16x1xf32>
    %23 = vector.broadcast %22 : vector<16x1xf32> to vector<16x16xf32>
    %24 = vector.broadcast %20 : vector<1x16xf32> to vector<16x16xf32>
    %25 = arith.mulf %23, %24 : vector<16x16xf32>
    %c0_i32 = arith.constant 0 : i32
    %26 = vector.broadcast %c0_i32 : i32 to vector<16x16xi32>
    %27 = arith.cmpi sgt, %9, %26 : vector<16x16xi32>
    %cst_2 = arith.constant 0.000000e+00 : f32
    %28 = vector.broadcast %cst_2 : f32 to vector<16x16xf32>
    %29 = arith.select %27, %25, %28 : vector<16x16xi1>, vector<16x16xf32>
    %30 = arith.subf %14, %29 : vector<16x16xf32>
    %31 = vector.extract_strided_slice %30 {offsets = [1, 1], sizes = [1, 1], strides = [1, 1]} : vector<16x16xf32> to vector<1x1xf32>
    %32 = math.log %31 : vector<1x1xf32>
    %33 = arith.addf %18, %32 : vector<1x1xf32>
    %34 = vector.extract_strided_slice %30 {offsets = [0, 1], sizes = [16, 1], strides = [1, 1]} : vector<16x16xf32> to vector<16x1xf32>
    %35 = vector.extract_strided_slice %30 {offsets = [1, 0], sizes = [1, 16], strides = [1, 1]} : vector<16x16xf32> to vector<1x16xf32>
    %36 = vector.broadcast %31 : vector<1x1xf32> to vector<16x1xf32>
    %37 = arith.divf %34, %36 : vector<16x1xf32>
    %38 = vector.broadcast %37 : vector<16x1xf32> to vector<16x16xf32>
    %39 = vector.broadcast %35 : vector<1x16xf32> to vector<16x16xf32>
    %40 = arith.mulf %38, %39 : vector<16x16xf32>
    %c1_i32 = arith.constant 1 : i32
    %41 = vector.broadcast %c1_i32 : i32 to vector<16x16xi32>
    %42 = arith.cmpi sgt, %9, %41 : vector<16x16xi32>
    %cst_3 = arith.constant 0.000000e+00 : f32
    %43 = vector.broadcast %cst_3 : f32 to vector<16x16xf32>
    %44 = arith.select %42, %40, %43 : vector<16x16xi1>, vector<16x16xf32>
    %45 = arith.subf %30, %44 : vector<16x16xf32>
    %46 = vector.extract_strided_slice %45 {offsets = [2, 2], sizes = [1, 1], strides = [1, 1]} : vector<16x16xf32> to vector<1x1xf32>
    %47 = math.log %46 : vector<1x1xf32>
    %48 = arith.addf %33, %47 : vector<1x1xf32>
    %49 = vector.extract_strided_slice %45 {offsets = [0, 2], sizes = [16, 1], strides = [1, 1]} : vector<16x16xf32> to vector<16x1xf32>
    %50 = vector.extract_strided_slice %45 {offsets = [2, 0], sizes = [1, 16], strides = [1, 1]} : vector<16x16xf32> to vector<1x16xf32>
    %51 = vector.broadcast %46 : vector<1x1xf32> to vector<16x1xf32>
    %52 = arith.divf %49, %51 : vector<16x1xf32>
    %53 = vector.broadcast %52 : vector<16x1xf32> to vector<16x16xf32>
    %54 = vector.broadcast %50 : vector<1x16xf32> to vector<16x16xf32>
    %55 = arith.mulf %53, %54 : vector<16x16xf32>
    %c2_i32 = arith.constant 2 : i32
    %56 = vector.broadcast %c2_i32 : i32 to vector<16x16xi32>
    %57 = arith.cmpi sgt, %9, %56 : vector<16x16xi32>
    %cst_4 = arith.constant 0.000000e+00 : f32
    %58 = vector.broadcast %cst_4 : f32 to vector<16x16xf32>
    %59 = arith.select %57, %55, %58 : vector<16x16xi1>, vector<16x16xf32>
    %60 = arith.subf %45, %59 : vector<16x16xf32>
    %61 = vector.extract_strided_slice %60 {offsets = [3, 3], sizes = [1, 1], strides = [1, 1]} : vector<16x16xf32> to vector<1x1xf32>
    %62 = math.log %61 : vector<1x1xf32>
    %63 = arith.addf %48, %62 : vector<1x1xf32>
    %64 = vector.extract_strided_slice %60 {offsets = [0, 3], sizes = [16, 1], strides = [1, 1]} : vector<16x16xf32> to vector<16x1xf32>
    %65 = vector.extract_strided_slice %60 {offsets = [3, 0], sizes = [1, 16], strides = [1, 1]} : vector<16x16xf32> to vector<1x16xf32>
    %66 = vector.broadcast %61 : vector<1x1xf32> to vector<16x1xf32>
    %67 = arith.divf %64, %66 : vector<16x1xf32>
    %68 = vector.broadcast %67 : vector<16x1xf32> to vector<16x16xf32>
    %69 = vector.broadcast %65 : vector<1x16xf32> to vector<16x16xf32>
    %70 = arith.mulf %68, %69 : vector<16x16xf32>
    %c3_i32 = arith.constant 3 : i32
    %71 = vector.broadcast %c3_i32 : i32 to vector<16x16xi32>
    %72 = arith.cmpi sgt, %9, %71 : vector<16x16xi32>
    %cst_5 = arith.constant 0.000000e+00 : f32
    %73 = vector.broadcast %cst_5 : f32 to vector<16x16xf32>
    %74 = arith.select %72, %70, %73 : vector<16x16xi1>, vector<16x16xf32>
    %75 = arith.subf %60, %74 : vector<16x16xf32>
    %76 = vector.extract_strided_slice %75 {offsets = [4, 4], sizes = [1, 1], strides = [1, 1]} : vector<16x16xf32> to vector<1x1xf32>
    %77 = math.log %76 : vector<1x1xf32>
    %78 = arith.addf %63, %77 : vector<1x1xf32>
    %79 = vector.extract_strided_slice %75 {offsets = [0, 4], sizes = [16, 1], strides = [1, 1]} : vector<16x16xf32> to vector<16x1xf32>
    %80 = vector.extract_strided_slice %75 {offsets = [4, 0], sizes = [1, 16], strides = [1, 1]} : vector<16x16xf32> to vector<1x16xf32>
    %81 = vector.broadcast %76 : vector<1x1xf32> to vector<16x1xf32>
    %82 = arith.divf %79, %81 : vector<16x1xf32>
    %83 = vector.broadcast %82 : vector<16x1xf32> to vector<16x16xf32>
    %84 = vector.broadcast %80 : vector<1x16xf32> to vector<16x16xf32>
    %85 = arith.mulf %83, %84 : vector<16x16xf32>
    %c4_i32 = arith.constant 4 : i32
    %86 = vector.broadcast %c4_i32 : i32 to vector<16x16xi32>
    %87 = arith.cmpi sgt, %9, %86 : vector<16x16xi32>
    %cst_6 = arith.constant 0.000000e+00 : f32
    %88 = vector.broadcast %cst_6 : f32 to vector<16x16xf32>
    %89 = arith.select %87, %85, %88 : vector<16x16xi1>, vector<16x16xf32>
    %90 = arith.subf %75, %89 : vector<16x16xf32>
    %91 = vector.extract_strided_slice %90 {offsets = [5, 5], sizes = [1, 1], strides = [1, 1]} : vector<16x16xf32> to vector<1x1xf32>
    %92 = math.log %91 : vector<1x1xf32>
    %93 = arith.addf %78, %92 : vector<1x1xf32>
    %94 = vector.extract_strided_slice %90 {offsets = [0, 5], sizes = [16, 1], strides = [1, 1]} : vector<16x16xf32> to vector<16x1xf32>
    %95 = vector.extract_strided_slice %90 {offsets = [5, 0], sizes = [1, 16], strides = [1, 1]} : vector<16x16xf32> to vector<1x16xf32>
    %96 = vector.broadcast %91 : vector<1x1xf32> to vector<16x1xf32>
    %97 = arith.divf %94, %96 : vector<16x1xf32>
    %98 = vector.broadcast %97 : vector<16x1xf32> to vector<16x16xf32>
    %99 = vector.broadcast %95 : vector<1x16xf32> to vector<16x16xf32>
    %100 = arith.mulf %98, %99 : vector<16x16xf32>
    %c5_i32 = arith.constant 5 : i32
    %101 = vector.broadcast %c5_i32 : i32 to vector<16x16xi32>
    %102 = arith.cmpi sgt, %9, %101 : vector<16x16xi32>
    %cst_7 = arith.constant 0.000000e+00 : f32
    %103 = vector.broadcast %cst_7 : f32 to vector<16x16xf32>
    %104 = arith.select %102, %100, %103 : vector<16x16xi1>, vector<16x16xf32>
    %105 = arith.subf %90, %104 : vector<16x16xf32>
    %106 = vector.extract_strided_slice %105 {offsets = [6, 6], sizes = [1, 1], strides = [1, 1]} : vector<16x16xf32> to vector<1x1xf32>
    %107 = math.log %106 : vector<1x1xf32>
    %108 = arith.addf %93, %107 : vector<1x1xf32>
    %109 = vector.extract_strided_slice %105 {offsets = [0, 6], sizes = [16, 1], strides = [1, 1]} : vector<16x16xf32> to vector<16x1xf32>
    %110 = vector.extract_strided_slice %105 {offsets = [6, 0], sizes = [1, 16], strides = [1, 1]} : vector<16x16xf32> to vector<1x16xf32>
    %111 = vector.broadcast %106 : vector<1x1xf32> to vector<16x1xf32>
    %112 = arith.divf %109, %111 : vector<16x1xf32>
    %113 = vector.broadcast %112 : vector<16x1xf32> to vector<16x16xf32>
    %114 = vector.broadcast %110 : vector<1x16xf32> to vector<16x16xf32>
    %115 = arith.mulf %113, %114 : vector<16x16xf32>
    %c6_i32 = arith.constant 6 : i32
    %116 = vector.broadcast %c6_i32 : i32 to vector<16x16xi32>
    %117 = arith.cmpi sgt, %9, %116 : vector<16x16xi32>
    %cst_8 = arith.constant 0.000000e+00 : f32
    %118 = vector.broadcast %cst_8 : f32 to vector<16x16xf32>
    %119 = arith.select %117, %115, %118 : vector<16x16xi1>, vector<16x16xf32>
    %120 = arith.subf %105, %119 : vector<16x16xf32>
    %121 = vector.extract_strided_slice %120 {offsets = [7, 7], sizes = [1, 1], strides = [1, 1]} : vector<16x16xf32> to vector<1x1xf32>
    %122 = math.log %121 : vector<1x1xf32>
    %123 = arith.addf %108, %122 : vector<1x1xf32>
    %124 = vector.extract_strided_slice %120 {offsets = [0, 7], sizes = [16, 1], strides = [1, 1]} : vector<16x16xf32> to vector<16x1xf32>
    %125 = vector.extract_strided_slice %120 {offsets = [7, 0], sizes = [1, 16], strides = [1, 1]} : vector<16x16xf32> to vector<1x16xf32>
    %126 = vector.broadcast %121 : vector<1x1xf32> to vector<16x1xf32>
    %127 = arith.divf %124, %126 : vector<16x1xf32>
    %128 = vector.broadcast %127 : vector<16x1xf32> to vector<16x16xf32>
    %129 = vector.broadcast %125 : vector<1x16xf32> to vector<16x16xf32>
    %130 = arith.mulf %128, %129 : vector<16x16xf32>
    %c7_i32 = arith.constant 7 : i32
    %131 = vector.broadcast %c7_i32 : i32 to vector<16x16xi32>
    %132 = arith.cmpi sgt, %9, %131 : vector<16x16xi32>
    %cst_9 = arith.constant 0.000000e+00 : f32
    %133 = vector.broadcast %cst_9 : f32 to vector<16x16xf32>
    %134 = arith.select %132, %130, %133 : vector<16x16xi1>, vector<16x16xf32>
    %135 = arith.subf %120, %134 : vector<16x16xf32>
    %136 = vector.extract_strided_slice %135 {offsets = [8, 8], sizes = [1, 1], strides = [1, 1]} : vector<16x16xf32> to vector<1x1xf32>
    %137 = math.log %136 : vector<1x1xf32>
    %138 = arith.addf %123, %137 : vector<1x1xf32>
    %139 = vector.extract_strided_slice %135 {offsets = [0, 8], sizes = [16, 1], strides = [1, 1]} : vector<16x16xf32> to vector<16x1xf32>
    %140 = vector.extract_strided_slice %135 {offsets = [8, 0], sizes = [1, 16], strides = [1, 1]} : vector<16x16xf32> to vector<1x16xf32>
    %141 = vector.broadcast %136 : vector<1x1xf32> to vector<16x1xf32>
    %142 = arith.divf %139, %141 : vector<16x1xf32>
    %143 = vector.broadcast %142 : vector<16x1xf32> to vector<16x16xf32>
    %144 = vector.broadcast %140 : vector<1x16xf32> to vector<16x16xf32>
    %145 = arith.mulf %143, %144 : vector<16x16xf32>
    %c8_i32 = arith.constant 8 : i32
    %146 = vector.broadcast %c8_i32 : i32 to vector<16x16xi32>
    %147 = arith.cmpi sgt, %9, %146 : vector<16x16xi32>
    %cst_10 = arith.constant 0.000000e+00 : f32
    %148 = vector.broadcast %cst_10 : f32 to vector<16x16xf32>
    %149 = arith.select %147, %145, %148 : vector<16x16xi1>, vector<16x16xf32>
    %150 = arith.subf %135, %149 : vector<16x16xf32>
    %151 = vector.extract_strided_slice %150 {offsets = [9, 9], sizes = [1, 1], strides = [1, 1]} : vector<16x16xf32> to vector<1x1xf32>
    %152 = math.log %151 : vector<1x1xf32>
    %153 = arith.addf %138, %152 : vector<1x1xf32>
    %154 = vector.extract_strided_slice %150 {offsets = [0, 9], sizes = [16, 1], strides = [1, 1]} : vector<16x16xf32> to vector<16x1xf32>
    %155 = vector.extract_strided_slice %150 {offsets = [9, 0], sizes = [1, 16], strides = [1, 1]} : vector<16x16xf32> to vector<1x16xf32>
    %156 = vector.broadcast %151 : vector<1x1xf32> to vector<16x1xf32>
    %157 = arith.divf %154, %156 : vector<16x1xf32>
    %158 = vector.broadcast %157 : vector<16x1xf32> to vector<16x16xf32>
    %159 = vector.broadcast %155 : vector<1x16xf32> to vector<16x16xf32>
    %160 = arith.mulf %158, %159 : vector<16x16xf32>
    %c9_i32 = arith.constant 9 : i32
    %161 = vector.broadcast %c9_i32 : i32 to vector<16x16xi32>
    %162 = arith.cmpi sgt, %9, %161 : vector<16x16xi32>
    %cst_11 = arith.constant 0.000000e+00 : f32
    %163 = vector.broadcast %cst_11 : f32 to vector<16x16xf32>
    %164 = arith.select %162, %160, %163 : vector<16x16xi1>, vector<16x16xf32>
    %165 = arith.subf %150, %164 : vector<16x16xf32>
    %166 = vector.extract_strided_slice %165 {offsets = [10, 10], sizes = [1, 1], strides = [1, 1]} : vector<16x16xf32> to vector<1x1xf32>
    %167 = math.log %166 : vector<1x1xf32>
    %168 = arith.addf %153, %167 : vector<1x1xf32>
    %169 = vector.extract_strided_slice %165 {offsets = [0, 10], sizes = [16, 1], strides = [1, 1]} : vector<16x16xf32> to vector<16x1xf32>
    %170 = vector.extract_strided_slice %165 {offsets = [10, 0], sizes = [1, 16], strides = [1, 1]} : vector<16x16xf32> to vector<1x16xf32>
    %171 = vector.broadcast %166 : vector<1x1xf32> to vector<16x1xf32>
    %172 = arith.divf %169, %171 : vector<16x1xf32>
    %173 = vector.broadcast %172 : vector<16x1xf32> to vector<16x16xf32>
    %174 = vector.broadcast %170 : vector<1x16xf32> to vector<16x16xf32>
    %175 = arith.mulf %173, %174 : vector<16x16xf32>
    %c10_i32 = arith.constant 10 : i32
    %176 = vector.broadcast %c10_i32 : i32 to vector<16x16xi32>
    %177 = arith.cmpi sgt, %9, %176 : vector<16x16xi32>
    %cst_12 = arith.constant 0.000000e+00 : f32
    %178 = vector.broadcast %cst_12 : f32 to vector<16x16xf32>
    %179 = arith.select %177, %175, %178 : vector<16x16xi1>, vector<16x16xf32>
    %180 = arith.subf %165, %179 : vector<16x16xf32>
    %181 = vector.extract_strided_slice %180 {offsets = [11, 11], sizes = [1, 1], strides = [1, 1]} : vector<16x16xf32> to vector<1x1xf32>
    %182 = math.log %181 : vector<1x1xf32>
    %183 = arith.addf %168, %182 : vector<1x1xf32>
    %184 = vector.extract_strided_slice %180 {offsets = [0, 11], sizes = [16, 1], strides = [1, 1]} : vector<16x16xf32> to vector<16x1xf32>
    %185 = vector.extract_strided_slice %180 {offsets = [11, 0], sizes = [1, 16], strides = [1, 1]} : vector<16x16xf32> to vector<1x16xf32>
    %186 = vector.broadcast %181 : vector<1x1xf32> to vector<16x1xf32>
    %187 = arith.divf %184, %186 : vector<16x1xf32>
    %188 = vector.broadcast %187 : vector<16x1xf32> to vector<16x16xf32>
    %189 = vector.broadcast %185 : vector<1x16xf32> to vector<16x16xf32>
    %190 = arith.mulf %188, %189 : vector<16x16xf32>
    %c11_i32 = arith.constant 11 : i32
    %191 = vector.broadcast %c11_i32 : i32 to vector<16x16xi32>
    %192 = arith.cmpi sgt, %9, %191 : vector<16x16xi32>
    %cst_13 = arith.constant 0.000000e+00 : f32
    %193 = vector.broadcast %cst_13 : f32 to vector<16x16xf32>
    %194 = arith.select %192, %190, %193 : vector<16x16xi1>, vector<16x16xf32>
    %195 = arith.subf %180, %194 : vector<16x16xf32>
    %196 = vector.extract_strided_slice %195 {offsets = [12, 12], sizes = [1, 1], strides = [1, 1]} : vector<16x16xf32> to vector<1x1xf32>
    %197 = math.log %196 : vector<1x1xf32>
    %198 = arith.addf %183, %197 : vector<1x1xf32>
    %199 = vector.extract_strided_slice %195 {offsets = [0, 12], sizes = [16, 1], strides = [1, 1]} : vector<16x16xf32> to vector<16x1xf32>
    %200 = vector.extract_strided_slice %195 {offsets = [12, 0], sizes = [1, 16], strides = [1, 1]} : vector<16x16xf32> to vector<1x16xf32>
    %201 = vector.broadcast %196 : vector<1x1xf32> to vector<16x1xf32>
    %202 = arith.divf %199, %201 : vector<16x1xf32>
    %203 = vector.broadcast %202 : vector<16x1xf32> to vector<16x16xf32>
    %204 = vector.broadcast %200 : vector<1x16xf32> to vector<16x16xf32>
    %205 = arith.mulf %203, %204 : vector<16x16xf32>
    %c12_i32 = arith.constant 12 : i32
    %206 = vector.broadcast %c12_i32 : i32 to vector<16x16xi32>
    %207 = arith.cmpi sgt, %9, %206 : vector<16x16xi32>
    %cst_14 = arith.constant 0.000000e+00 : f32
    %208 = vector.broadcast %cst_14 : f32 to vector<16x16xf32>
    %209 = arith.select %207, %205, %208 : vector<16x16xi1>, vector<16x16xf32>
    %210 = arith.subf %195, %209 : vector<16x16xf32>
    %211 = vector.extract_strided_slice %210 {offsets = [13, 13], sizes = [1, 1], strides = [1, 1]} : vector<16x16xf32> to vector<1x1xf32>
    %212 = math.log %211 : vector<1x1xf32>
    %213 = arith.addf %198, %212 : vector<1x1xf32>
    %214 = vector.extract_strided_slice %210 {offsets = [0, 13], sizes = [16, 1], strides = [1, 1]} : vector<16x16xf32> to vector<16x1xf32>
    %215 = vector.extract_strided_slice %210 {offsets = [13, 0], sizes = [1, 16], strides = [1, 1]} : vector<16x16xf32> to vector<1x16xf32>
    %216 = vector.broadcast %211 : vector<1x1xf32> to vector<16x1xf32>
    %217 = arith.divf %214, %216 : vector<16x1xf32>
    %218 = vector.broadcast %217 : vector<16x1xf32> to vector<16x16xf32>
    %219 = vector.broadcast %215 : vector<1x16xf32> to vector<16x16xf32>
    %220 = arith.mulf %218, %219 : vector<16x16xf32>
    %c13_i32 = arith.constant 13 : i32
    %221 = vector.broadcast %c13_i32 : i32 to vector<16x16xi32>
    %222 = arith.cmpi sgt, %9, %221 : vector<16x16xi32>
    %cst_15 = arith.constant 0.000000e+00 : f32
    %223 = vector.broadcast %cst_15 : f32 to vector<16x16xf32>
    %224 = arith.select %222, %220, %223 : vector<16x16xi1>, vector<16x16xf32>
    %225 = arith.subf %210, %224 : vector<16x16xf32>
    %226 = vector.extract_strided_slice %225 {offsets = [14, 14], sizes = [1, 1], strides = [1, 1]} : vector<16x16xf32> to vector<1x1xf32>
    %227 = math.log %226 : vector<1x1xf32>
    %228 = arith.addf %213, %227 : vector<1x1xf32>
    %229 = vector.extract_strided_slice %225 {offsets = [0, 14], sizes = [16, 1], strides = [1, 1]} : vector<16x16xf32> to vector<16x1xf32>
    %230 = vector.extract_strided_slice %225 {offsets = [14, 0], sizes = [1, 16], strides = [1, 1]} : vector<16x16xf32> to vector<1x16xf32>
    %231 = vector.broadcast %226 : vector<1x1xf32> to vector<16x1xf32>
    %232 = arith.divf %229, %231 : vector<16x1xf32>
    %233 = vector.broadcast %232 : vector<16x1xf32> to vector<16x16xf32>
    %234 = vector.broadcast %230 : vector<1x16xf32> to vector<16x16xf32>
    %235 = arith.mulf %233, %234 : vector<16x16xf32>
    %c14_i32 = arith.constant 14 : i32
    %236 = vector.broadcast %c14_i32 : i32 to vector<16x16xi32>
    %237 = arith.cmpi sgt, %9, %236 : vector<16x16xi32>
    %cst_16 = arith.constant 0.000000e+00 : f32
    %238 = vector.broadcast %cst_16 : f32 to vector<16x16xf32>
    %239 = arith.select %237, %235, %238 : vector<16x16xi1>, vector<16x16xf32>
    %240 = arith.subf %225, %239 : vector<16x16xf32>
    %241 = vector.extract_strided_slice %240 {offsets = [15, 15], sizes = [1, 1], strides = [1, 1]} : vector<16x16xf32> to vector<1x1xf32>
    %242 = math.log %241 : vector<1x1xf32>
    %243 = arith.addf %228, %242 : vector<1x1xf32>
    %c0_17 = arith.constant 0 : index
    %c0_18 = arith.constant 0 : index
    %244 = vector.load %arg1[%c0_17, %c0_18] : memref<1x1xf32, #tpu.memory_space<vmem>>, vector<1x1xf32>
    tpu.vector_store %arg1[%c0_17, %c0_18], %243 {strides = array<i32>} : memref<1x1xf32, #tpu.memory_space<vmem>>, vector<1x1xf32>,
    return
  }
}

</mosaic_0001>

<llo_original>
// kernel: tpu_custom_call.1
$region0: #{tpu_custom_call.1}
  #allocation0 [shape = 'u32[]', space=smem, size = 0x4, offset = 0x4, fixed_abs, tag = 'smem constant byte address 0x4 - core index']
  #allocation1 [shape = 'u32[72,128]{1,0:T(1,128)}', space=vmem, size = 0x9000, scoped, tag = 'internal scratch']
  %s0 = inlined_call_operand.vmem [shape: bf16[32,16], index: 0, kind: input, shape index: {}]
  %s1 = inlined_call_operand.hbm [shape: f32[1,1], index: 1, kind: output, shape index: {}]
  %s2 = sld [smem:[#allocation0]]
  $region14: #{tpu_custom_call.1} parent=0
    _
  %s4 = ssub.s32 1, %s2
  %s5 = scalar_select 0, %s4, %s2
  $region1: #{tpu_custom_call.1} parent=0
    #allocation2 [shape = 'u8[512]{0}', space=vmem, size = 0x400, scoped, tag = 'output window, operand 0, single buffered']
    #allocation3 [shape = 's32[1]{0}', space=sflag, size = 0x4, scoped, tag = 'scoped memory for tpu_custom_call.1']
    %6 = vsyncpa [#allocation3], 0
    // Predicated region
    $region2: #{tpu_custom_call.1} parent=1 // pred_check
      _
    $region3: #{tpu_custom_call.1} parent=1 // pred_check_branch
      %8 = sbr.rel (0) target = $region5
    $region4: #{tpu_custom_call.1} parent=1 // pred_region
      _
    $region5: #{tpu_custom_call.1} parent=1 // pred_fallthru
      _
    %v10 = vld [vmem:[%s0] sm:$0xf]
    %v11 = vld [vmem:[%s0 + $0x4] sm:$0xf]
    %v12 = vld [vmem:[%s0 + $0x8] sm:$0xf]
    %v13 = vld [vmem:[%s0 + $0xc] sm:$0xf]
    %v18 = vunpack.c.l.b16 %v10
    %v19 = vunpack.c.l.b16 %v11
    %v20 = vunpack.c.l.b16 %v12
    %v21 = vunpack.c.l.b16 %v13
    %v22 = vpack.c.b16 %v19, %v18
    %v23 = vpack.c.b16 %v21, %v20
    %vm24 = vcmask 130048
    %v26 = vsel %vm24, %v22, 0
    %v29 = vsel %vm24, %v23, 0
    %31 = vmatpush.bf16.xpose.msra.mxu0 0
    %32 = vmatpush.bf16.xpose.msra.mxu0 0
    %33 = vmatpush.bf16.xpose.msra.mxu0 0
    %34 = vmatpush.bf16.xpose.msra.mxu0 0
    %35 = vmatpush.bf16.xpose.msra.mxu0 0
    %36 = vmatpush.bf16.xpose.msra.mxu0 0
    %37 = vmatpush.bf16.xpose.msra.mxu0 %v29
    %38 = vmatpush.bf16.xpose.msra.mxu0 %v26
    %39 = vmatmul.bf16.gmra.mxu0 %v26
    %v40 = vpop.f32.mrf.mxu0
    %v41 = vadd.f32 0.0, %v40
    %v42 = vpop.f32.mrf.mxu0
    %v43 = vadd.f32 0.0, %v42
    %44 = vmatmul.bf16.gmra.mxu0 %v29
    %v45 = vpop.f32.mrf.mxu0
    %v46 = vadd.f32 0.0, %v45
    %v47 = vpop.f32.mrf.mxu0
    %v48 = vadd.f32 0.0, %v47
    %49 = vdwg.mxu0
    %52 = vrot.lane.b32.xlu0 %v41, 112
    %v53 = vpop.permute.xlu0 %52
    %54 = vrot.lane.b32.xlu0 %v43, 112
    %v55 = vpop.permute.xlu0 %54
    %v58 = vadd.f32 %v41, %v53
    %v59 = vadd.f32 %v43, %v55
    %v60 = vadd.f32 %v58, %v46
    %v61 = vadd.f32 %v59, %v48
    %64 = vrot.lane.b32.xlu0 %v46, 112
    %v65 = vpop.permute.xlu0 %64
    %66 = vrot.lane.b32.xlu0 %v48, 112
    %v67 = vpop.permute.xlu0 %66
    %v70 = vadd.f32 %v60, %v65
    %v71 = vadd.f32 %v61, %v67
    %v72 = vlaneseq
    %v73 = vshrl.u32 %v72, 7
    %v74 = vadd.s32 %v73, 8
    %v75 = vlaneseq
    %v76 = vand.u32 %v75, 127
    %vm77 = vcmp.eq.s32.totalorder %v73, %v76
    %vm78 = vcmp.eq.s32.totalorder %v74, %v76
    %v79 = vsel %vm77, 1, 0
    %v80 = vsel %vm78, 1, 0
    %v81 = vcvt.s32.f32 %v79
    %v82 = vcvt.s32.f32 %v80
    %v83 = vadd.f32 %v70, %v81
    %v84 = vadd.f32 %v71, %v82
    %v85 = vlog2.pop %v83
    %v86 = vmul.f32 %v85, 0.6931472
    %v87 = vadd.f32 %v86, 0.0
    %v88 = vperm.slane %v83, 0
    %v89 = vrcp.pop %v88
    %v90 = vmul.f32 %v88, %v89
    %v91 = vsub.f32 1.0, %v90
    %v92 = vmul.f32 %v89, %v91
    %v93 = vadd.f32 %v89, %v92
    %vm94 = vweird.f32 %v88
    %vm95 = vweird.f32 %v89
    %vm96 = vmor %vm94, %vm95
    %v97 = vsel %vm96, %v89, %v93
    %v98 = vand.u32 2147483647, %v88
    %vm99 = vcmp.eq.f32.partialorder %v98, 8.507059e+37
    %v100 = vand.u32 %v88, 2147483648
    %v101 = vor.u32 1.1754944e-38, %v100
    %v102 = vsel %vm99, %v101, %v97
    %v103 = vmul.f32 %v83, %v102
    %v104 = vmul.f32 %v84, %v102
    %106 = vset.pattern.permute.xlu0 0
    %107 = vperm.xlu0 %106, %v103
    %v108 = vpop.permute.xlu0 %107
    %111 = vset.pattern.permute.xlu0 0
    %112 = vperm.xlu0 %111, %v104
    %v113 = vpop.permute.xlu0 %112
    %v115 = vmul.f32 %v108, %v88
    %v116 = vmul.f32 %v113, %v88
    %vm117 = vcmp.gt.s32.totalorder %v73, 0
    %vm118 = vcmp.gt.s32.totalorder %v74, 0
    %v119 = vsel %vm117, %v115, 0.0
    %v120 = vsel %vm118, %v116, 0.0
    %v121 = vsub.f32 %v83, %v119
    %v122 = vsub.f32 %v84, %v120
    %v123 = vlog2.pop %v121
    %v124 = vmul.f32 %v123, 0.6931472
    %v126 = vrot.slane %v124, 1
    %127 = vrot.lane.b32.xlu0 %v126, 127
    %v128 = vpop.permute.xlu0 %127
    %v130 = vadd.f32 %v87, %v128
    %v131 = vperm.slane %v121, 1
    %v132 = vrcp.pop %v131
    %v133 = vmul.f32 %v131, %v132
    %v134 = vsub.f32 1.0, %v133
    %v135 = vmul.f32 %v132, %v134
    %v136 = vadd.f32 %v132, %v135
    %vm137 = vweird.f32 %v131
    %vm138 = vweird.f32 %v132
    %vm139 = vmor %vm137, %vm138
    %v140 = vsel %vm139, %v132, %v136
    %v141 = vand.u32 2147483647, %v131
    %vm142 = vcmp.eq.f32.partialorder %v141, 8.507059e+37
    %v143 = vand.u32 %v131, 2147483648
    %v144 = vor.u32 1.1754944e-38, %v143
    %v145 = vsel %vm142, %v144, %v140
    %v146 = vmul.f32 %v121, %v145
    %v147 = vmul.f32 %v122, %v145
    %149 = vset.pattern.permute.xlu0 1
    %150 = vperm.xlu0 %149, %v146
    %v151 = vpop.permute.xlu0 %150
    %154 = vset.pattern.permute.xlu0 1
    %155 = vperm.xlu0 %154, %v147
    %v156 = vpop.permute.xlu0 %155
    %v158 = vmul.f32 %v151, %v131
    %v159 = vmul.f32 %v156, %v131
    %vm160 = vcmp.gt.s32.totalorder %v73, 1
    %vm161 = vcmp.gt.s32.totalorder %v74, 1
    %v162 = vsel %vm160, %v158, 0.0
    %v163 = vsel %vm161, %v159, 0.0
    %v164 = vsub.f32 %v121, %v162
    %v165 = vsub.f32 %v122, %v163
    %v166 = vlog2.pop %v164
    %v167 = vmul.f32 %v166, 0.6931472
    %v169 = vrot.slane %v167, 2
    %170 = vrot.lane.b32.xlu0 %v169, 126
    %v171 = vpop.permute.xlu0 %170
    %v173 = vadd.f32 %v130, %v171
    %v174 = vperm.slane %v164, 2
    %v175 = vrcp.pop %v174
    %v176 = vmul.f32 %v174, %v175
    %v177 = vsub.f32 1.0, %v176
    %v178 = vmul.f32 %v175, %v177
    %v179 = vadd.f32 %v175, %v178
    %vm180 = vweird.f32 %v174
    %vm181 = vweird.f32 %v175
    %vm182 = vmor %vm180, %vm181
    %v183 = vsel %vm182, %v175, %v179
    %v184 = vand.u32 2147483647, %v174
    %vm185 = vcmp.eq.f32.partialorder %v184, 8.507059e+37
    %v186 = vand.u32 %v174, 2147483648
    %v187 = vor.u32 1.1754944e-38, %v186
    %v188 = vsel %vm185, %v187, %v183
    %v189 = vmul.f32 %v164, %v188
    %v190 = vmul.f32 %v165, %v188
    %192 = vset.pattern.permute.xlu0 2
    %193 = vperm.xlu0 %192, %v189
    %v194 = vpop.permute.xlu0 %193
    %197 = vset.pattern.permute.xlu0 2
    %198 = vperm.xlu0 %197, %v190
    %v199 = vpop.permute.xlu0 %198
    %v201 = vmul.f32 %v194, %v174
    %v202 = vmul.f32 %v199, %v174
    %vm203 = vcmp.gt.s32.totalorder %v73, 2
    %vm204 = vcmp.gt.s32.totalorder %v74, 2
    %v205 = vsel %vm203, %v201, 0.0
    %v206 = vsel %vm204, %v202, 0.0
    %v207 = vsub.f32 %v164, %v205
    %v208 = vsub.f32 %v165, %v206
    %v209 = vlog2.pop %v207
    %v210 = vmul.f32 %v209, 0.6931472
    %v212 = vrot.slane %v210, 3
    %213 = vrot.lane.b32.xlu0 %v212, 125
    %v214 = vpop.permute.xlu0 %213
    %v216 = vadd.f32 %v173, %v214
    %v217 = vperm.slane %v207, 3
    %v218 = vrcp.pop %v217
    %v219 = vmul.f32 %v217, %v218
    %v220 = vsub.f32 1.0, %v219
    %v221 = vmul.f32 %v218, %v220
    %v222 = vadd.f32 %v218, %v221
    %vm223 = vweird.f32 %v217
    %vm224 = vweird.f32 %v218
    %vm225 = vmor %vm223, %vm224
    %v226 = vsel %vm225, %v218, %v222
    %v227 = vand.u32 2147483647, %v217
    %vm228 = vcmp.eq.f32.partialorder %v227, 8.507059e+37
    %v229 = vand.u32 %v217, 2147483648
    %v230 = vor.u32 1.1754944e-38, %v229
    %v231 = vsel %vm228, %v230, %v226
    %v232 = vmul.f32 %v207, %v231
    %v233 = vmul.f32 %v208, %v231
    %235 = vset.pattern.permute.xlu0 3
    %236 = vperm.xlu0 %235, %v232
    %v237 = vpop.permute.xlu0 %236
    %240 = vset.pattern.permute.xlu0 3
    %241 = vperm.xlu0 %240, %v233
    %v242 = vpop.permute.xlu0 %241
    %v244 = vmul.f32 %v237, %v217
    %v245 = vmul.f32 %v242, %v217
    %vm246 = vcmp.gt.s32.totalorder %v73, 3
    %vm247 = vcmp.gt.s32.totalorder %v74, 3
    %v248 = vsel %vm246, %v244, 0.0
    %v249 = vsel %vm247, %v245, 0.0
    %v250 = vsub.f32 %v207, %v248
    %v251 = vsub.f32 %v208, %v249
    %v252 = vlog2.pop %v250
    %v253 = vmul.f32 %v252, 0.6931472
    %v255 = vrot.slane %v253, 4
    %256 = vrot.lane.b32.xlu0 %v255, 124
    %v257 = vpop.permute.xlu0 %256
    %v259 = vadd.f32 %v216, %v257
    %v260 = vperm.slane %v250, 4
    %v261 = vrcp.pop %v260
    %v262 = vmul.f32 %v260, %v261
    %v263 = vsub.f32 1.0, %v262
    %v264 = vmul.f32 %v261, %v263
    %v265 = vadd.f32 %v261, %v264
    %vm266 = vweird.f32 %v260
    %vm267 = vweird.f32 %v261
    %vm268 = vmor %vm266, %vm267
    %v269 = vsel %vm268, %v261, %v265
    %v270 = vand.u32 2147483647, %v260
    %vm271 = vcmp.eq.f32.partialorder %v270, 8.507059e+37
    %v272 = vand.u32 %v260, 2147483648
    %v273 = vor.u32 1.1754944e-38, %v272
    %v274 = vsel %vm271, %v273, %v269
    %v275 = vmul.f32 %v250, %v274
    %v276 = vmul.f32 %v251, %v274
    %278 = vset.pattern.permute.xlu0 4
    %279 = vperm.xlu0 %278, %v275
    %v280 = vpop.permute.xlu0 %279
    %283 = vset.pattern.permute.xlu0 4
    %284 = vperm.xlu0 %283, %v276
    %v285 = vpop.permute.xlu0 %284
    %v287 = vmul.f32 %v280, %v260
    %v288 = vmul.f32 %v285, %v260
    %vm289 = vcmp.gt.s32.totalorder %v73, 4
    %vm290 = vcmp.gt.s32.totalorder %v74, 4
    %v291 = vsel %vm289, %v287, 0.0
    %v292 = vsel %vm290, %v288, 0.0
    %v293 = vsub.f32 %v250, %v291
    %v294 = vsub.f32 %v251, %v292
    %v295 = vlog2.pop %v293
    %v296 = vmul.f32 %v295, 0.6931472
    %v298 = vrot.slane %v296, 5
    %299 = vrot.lane.b32.xlu0 %v298, 123
    %v300 = vpop.permute.xlu0 %299
    %v302 = vadd.f32 %v259, %v300
    %v303 = vperm.slane %v293, 5
    %v304 = vrcp.pop %v303
    %v305 = vmul.f32 %v303, %v304
    %v306 = vsub.f32 1.0, %v305
    %v307 = vmul.f32 %v304, %v306
    %v308 = vadd.f32 %v304, %v307
    %vm309 = vweird.f32 %v303
    %vm310 = vweird.f32 %v304
    %vm311 = vmor %vm309, %vm310
    %v312 = vsel %vm311, %v304, %v308
    %v313 = vand.u32 2147483647, %v303
    %vm314 = vcmp.eq.f32.partialorder %v313, 8.507059e+37
    %v315 = vand.u32 %v303, 2147483648
    %v316 = vor.u32 1.1754944e-38, %v315
    %v317 = vsel %vm314, %v316, %v312
    %v318 = vmul.f32 %v293, %v317
    %v319 = vmul.f32 %v294, %v317
    %321 = vset.pattern.permute.xlu0 5
    %322 = vperm.xlu0 %321, %v318
    %v323 = vpop.permute.xlu0 %322
    %326 = vset.pattern.permute.xlu0 5
    %327 = vperm.xlu0 %326, %v319
    %v328 = vpop.permute.xlu0 %327
    %v330 = vmul.f32 %v323, %v303
    %v331 = vmul.f32 %v328, %v303
    %vm332 = vcmp.gt.s32.totalorder %v73, 5
    %vm333 = vcmp.gt.s32.totalorder %v74, 5
    %v334 = vsel %vm332, %v330, 0.0
    %v335 = vsel %vm333, %v331, 0.0
    %v336 = vsub.f32 %v293, %v334
    %v337 = vsub.f32 %v294, %v335
    %v338 = vlog2.pop %v336
    %v339 = vmul.f32 %v338, 0.6931472
    %v341 = vrot.slane %v339, 6
    %342 = vrot.lane.b32.xlu0 %v341, 122
    %v343 = vpop.permute.xlu0 %342
    %v345 = vadd.f32 %v302, %v343
    %v346 = vperm.slane %v336, 6
    %v347 = vrcp.pop %v346
    %v348 = vmul.f32 %v346, %v347
    %v349 = vsub.f32 1.0, %v348
    %v350 = vmul.f32 %v347, %v349
    %v351 = vadd.f32 %v347, %v350
    %vm352 = vweird.f32 %v346
    %vm353 = vweird.f32 %v347
    %vm354 = vmor %vm352, %vm353
    %v355 = vsel %vm354, %v347, %v351
    %v356 = vand.u32 2147483647, %v346
    %vm357 = vcmp.eq.f32.partialorder %v356, 8.507059e+37
    %v358 = vand.u32 %v346, 2147483648
    %v359 = vor.u32 1.1754944e-38, %v358
    %v360 = vsel %vm357, %v359, %v355
    %v361 = vmul.f32 %v336, %v360
    %v362 = vmul.f32 %v337, %v360
    %364 = vset.pattern.permute.xlu0 6
    %365 = vperm.xlu0 %364, %v361
    %v366 = vpop.permute.xlu0 %365
    %369 = vset.pattern.permute.xlu0 6
    %370 = vperm.xlu0 %369, %v362
    %v371 = vpop.permute.xlu0 %370
    %v373 = vmul.f32 %v366, %v346
    %v374 = vmul.f32 %v371, %v346
    %vm375 = vcmp.gt.s32.totalorder %v73, 6
    %vm376 = vcmp.gt.s32.totalorder %v74, 6
    %v377 = vsel %vm375, %v373, 0.0
    %v378 = vsel %vm376, %v374, 0.0
    %v379 = vsub.f32 %v336, %v377
    %v380 = vsub.f32 %v337, %v378
    %v381 = vlog2.pop %v379
    %v382 = vmul.f32 %v381, 0.6931472
    %v384 = vrot.slane %v382, 7
    %385 = vrot.lane.b32.xlu0 %v384, 121
    %v386 = vpop.permute.xlu0 %385
    %v388 = vadd.f32 %v345, %v386
    %v389 = vperm.slane %v379, 7
    %v390 = vrcp.pop %v389
    %v391 = vmul.f32 %v389, %v390
    %v392 = vsub.f32 1.0, %v391
    %v393 = vmul.f32 %v390, %v392
    %v394 = vadd.f32 %v390, %v393
    %vm395 = vweird.f32 %v389
    %vm396 = vweird.f32 %v390
    %vm397 = vmor %vm395, %vm396
    %v398 = vsel %vm397, %v390, %v394
    %v399 = vand.u32 2147483647, %v389
    %vm400 = vcmp.eq.f32.partialorder %v399, 8.507059e+37
    %v401 = vand.u32 %v389, 2147483648
    %v402 = vor.u32 1.1754944e-38, %v401
    %v403 = vsel %vm400, %v402, %v398
    %v404 = vmul.f32 %v380, %v403
    %406 = vset.pattern.permute.xlu0 7
    %407 = vperm.xlu0 %406, %v404
    %v408 = vpop.permute.xlu0 %407
    %v410 = vmul.f32 %v408, %v389
    %vm411 = vcmp.gt.s32.totalorder %v74, 7
    %v412 = vsel %vm411, %v410, 0.0
    %v413 = vsub.f32 %v380, %v412
    %v414 = vlog2.pop %v413
    %v415 = vmul.f32 %v414, 0.6931472
    %417 = vrot.lane.b32.xlu0 %v415, 120
    %v418 = vpop.permute.xlu0 %417
    %v420 = vadd.f32 %v388, %v418
    %v421 = vperm.slane %v413, 0
    %v422 = vrcp.pop %v421
    %v423 = vmul.f32 %v421, %v422
    %v424 = vsub.f32 1.0, %v423
    %v425 = vmul.f32 %v422, %v424
    %v426 = vadd.f32 %v422, %v425
    %vm427 = vweird.f32 %v421
    %vm428 = vweird.f32 %v422
    %vm429 = vmor %vm427, %vm428
    %v430 = vsel %vm429, %v422, %v426
    %v431 = vand.u32 2147483647, %v421
    %vm432 = vcmp.eq.f32.partialorder %v431, 8.507059e+37
    %v433 = vand.u32 %v421, 2147483648
    %v434 = vor.u32 1.1754944e-38, %v433
    %v435 = vsel %vm432, %v434, %v430
    %v436 = vmul.f32 %v413, %v435
    %438 = vset.pattern.permute.xlu0 8
    %439 = vperm.xlu0 %438, %v436
    %v440 = vpop.permute.xlu0 %439
    %v442 = vmul.f32 %v440, %v421
    %vm443 = vcmp.gt.s32.totalorder %v74, 8
    %v444 = vsel %vm443, %v442, 0.0
    %v445 = vsub.f32 %v413, %v444
    %v446 = vlog2.pop %v445
    %v447 = vmul.f32 %v446, 0.6931472
    %v449 = vrot.slane %v447, 1
    %450 = vrot.lane.b32.xlu0 %v449, 119
    %v451 = vpop.permute.xlu0 %450
    %v453 = vadd.f32 %v420, %v451
    %v454 = vperm.slane %v445, 1
    %v455 = vrcp.pop %v454
    %v456 = vmul.f32 %v454, %v455
    %v457 = vsub.f32 1.0, %v456
    %v458 = vmul.f32 %v455, %v457
    %v459 = vadd.f32 %v455, %v458
    %vm460 = vweird.f32 %v454
    %vm461 = vweird.f32 %v455
    %vm462 = vmor %vm460, %vm461
    %v463 = vsel %vm462, %v455, %v459
    %v464 = vand.u32 2147483647, %v454
    %vm465 = vcmp.eq.f32.partialorder %v464, 8.507059e+37
    %v466 = vand.u32 %v454, 2147483648
    %v467 = vor.u32 1.1754944e-38, %v466
    %v468 = vsel %vm465, %v467, %v463
    %v469 = vmul.f32 %v445, %v468
    %471 = vset.pattern.permute.xlu0 9
    %472 = vperm.xlu0 %471, %v469
    %v473 = vpop.permute.xlu0 %472
    %v475 = vmul.f32 %v473, %v454
    %vm476 = vcmp.gt.s32.totalorder %v74, 9
    %v477 = vsel %vm476, %v475, 0.0
    %v478 = vsub.f32 %v445, %v477
    %v479 = vlog2.pop %v478
    %v480 = vmul.f32 %v479, 0.6931472
    %v482 = vrot.slane %v480, 2
    %483 = vrot.lane.b32.xlu0 %v482, 118
    %v484 = vpop.permute.xlu0 %483
    %v486 = vadd.f32 %v453, %v484
    %v487 = vperm.slane %v478, 2
    %v488 = vrcp.pop %v487
    %v489 = vmul.f32 %v487, %v488
    %v490 = vsub.f32 1.0, %v489
    %v491 = vmul.f32 %v488, %v490
    %v492 = vadd.f32 %v488, %v491
    %vm493 = vweird.f32 %v487
    %vm494 = vweird.f32 %v488
    %vm495 = vmor %vm493, %vm494
    %v496 = vsel %vm495, %v488, %v492
    %v497 = vand.u32 2147483647, %v487
    %vm498 = vcmp.eq.f32.partialorder %v497, 8.507059e+37
    %v499 = vand.u32 %v487, 2147483648
    %v500 = vor.u32 1.1754944e-38, %v499
    %v501 = vsel %vm498, %v500, %v496
    %v502 = vmul.f32 %v478, %v501
    %504 = vset.pattern.permute.xlu0 10
    %505 = vperm.xlu0 %504, %v502
    %v506 = vpop.permute.xlu0 %505
    %v508 = vmul.f32 %v506, %v487
    %vm509 = vcmp.gt.s32.totalorder %v74, 10
    %v510 = vsel %vm509, %v508, 0.0
    %v511 = vsub.f32 %v478, %v510
    %v512 = vlog2.pop %v511
    %v513 = vmul.f32 %v512, 0.6931472
    %v515 = vrot.slane %v513, 3
    %516 = vrot.lane.b32.xlu0 %v515, 117
    %v517 = vpop.permute.xlu0 %516
    %v519 = vadd.f32 %v486, %v517
    %v520 = vperm.slane %v511, 3
    %v521 = vrcp.pop %v520
    %v522 = vmul.f32 %v520, %v521
    %v523 = vsub.f32 1.0, %v522
    %v524 = vmul.f32 %v521, %v523
    %v525 = vadd.f32 %v521, %v524
    %vm526 = vweird.f32 %v520
    %vm527 = vweird.f32 %v521
    %vm528 = vmor %vm526, %vm527
    %v529 = vsel %vm528, %v521, %v525
    %v530 = vand.u32 2147483647, %v520
    %vm531 = vcmp.eq.f32.partialorder %v530, 8.507059e+37
    %v532 = vand.u32 %v520, 2147483648
    %v533 = vor.u32 1.1754944e-38, %v532
    %v534 = vsel %vm531, %v533, %v529
    %v535 = vmul.f32 %v511, %v534
    %537 = vset.pattern.permute.xlu0 11
    %538 = vperm.xlu0 %537, %v535
    %v539 = vpop.permute.xlu0 %538
    %v541 = vmul.f32 %v539, %v520
    %vm542 = vcmp.gt.s32.totalorder %v74, 11
    %v543 = vsel %vm542, %v541, 0.0
    %v544 = vsub.f32 %v511, %v543
    %v545 = vlog2.pop %v544
    %v546 = vmul.f32 %v545, 0.6931472
    %v548 = vrot.slane %v546, 4
    %549 = vrot.lane.b32.xlu0 %v548, 116
    %v550 = vpop.permute.xlu0 %549
    %v552 = vadd.f32 %v519, %v550
    %v553 = vperm.slane %v544, 4
    %v554 = vrcp.pop %v553
    %v555 = vmul.f32 %v553, %v554
    %v556 = vsub.f32 1.0, %v555
    %v557 = vmul.f32 %v554, %v556
    %v558 = vadd.f32 %v554, %v557
    %vm559 = vweird.f32 %v553
    %vm560 = vweird.f32 %v554
    %vm561 = vmor %vm559, %vm560
    %v562 = vsel %vm561, %v554, %v558
    %v563 = vand.u32 2147483647, %v553
    %vm564 = vcmp.eq.f32.partialorder %v563, 8.507059e+37
    %v565 = vand.u32 %v553, 2147483648
    %v566 = vor.u32 1.1754944e-38, %v565
    %v567 = vsel %vm564, %v566, %v562
    %v568 = vmul.f32 %v544, %v567
    %570 = vset.pattern.permute.xlu0 12
    %571 = vperm.xlu0 %570, %v568
    %v572 = vpop.permute.xlu0 %571
    %v574 = vmul.f32 %v572, %v553
    %vm575 = vcmp.gt.s32.totalorder %v74, 12
    %v576 = vsel %vm575, %v574, 0.0
    %v577 = vsub.f32 %v544, %v576
    %v578 = vlog2.pop %v577
    %v579 = vmul.f32 %v578, 0.6931472
    %v581 = vrot.slane %v579, 5
    %582 = vrot.lane.b32.xlu0 %v581, 115
    %v583 = vpop.permute.xlu0 %582
    %v585 = vadd.f32 %v552, %v583
    %v586 = vperm.slane %v577, 5
    %v587 = vrcp.pop %v586
    %v588 = vmul.f32 %v586, %v587
    %v589 = vsub.f32 1.0, %v588
    %v590 = vmul.f32 %v587, %v589
    %v591 = vadd.f32 %v587, %v590
    %vm592 = vweird.f32 %v586
    %vm593 = vweird.f32 %v587
    %vm594 = vmor %vm592, %vm593
    %v595 = vsel %vm594, %v587, %v591
    %v596 = vand.u32 2147483647, %v586
    %vm597 = vcmp.eq.f32.partialorder %v596, 8.507059e+37
    %v598 = vand.u32 %v586, 2147483648
    %v599 = vor.u32 1.1754944e-38, %v598
    %v600 = vsel %vm597, %v599, %v595
    %v601 = vmul.f32 %v577, %v600
    %603 = vset.pattern.permute.xlu0 13
    %604 = vperm.xlu0 %603, %v601
    %v605 = vpop.permute.xlu0 %604
    %v607 = vmul.f32 %v605, %v586
    %vm608 = vcmp.gt.s32.totalorder %v74, 13
    %v609 = vsel %vm608, %v607, 0.0
    %v610 = vsub.f32 %v577, %v609
    %v611 = vlog2.pop %v610
    %v612 = vmul.f32 %v611, 0.6931472
    %v614 = vrot.slane %v612, 6
    %615 = vrot.lane.b32.xlu0 %v614, 114
    %v616 = vpop.permute.xlu0 %615
    %v618 = vadd.f32 %v585, %v616
    %v619 = vperm.slane %v610, 6
    %v620 = vrcp.pop %v619
    %v621 = vmul.f32 %v619, %v620
    %v622 = vsub.f32 1.0, %v621
    %v623 = vmul.f32 %v620, %v622
    %v624 = vadd.f32 %v620, %v623
    %vm625 = vweird.f32 %v619
    %vm626 = vweird.f32 %v620
    %vm627 = vmor %vm625, %vm626
    %v628 = vsel %vm627, %v620, %v624
    %v629 = vand.u32 2147483647, %v619
    %vm630 = vcmp.eq.f32.partialorder %v629, 8.507059e+37
    %v631 = vand.u32 %v619, 2147483648
    %v632 = vor.u32 1.1754944e-38, %v631
    %v633 = vsel %vm630, %v632, %v628
    %v634 = vmul.f32 %v610, %v633
    %636 = vset.pattern.permute.xlu0 14
    %637 = vperm.xlu0 %636, %v634
    %v638 = vpop.permute.xlu0 %637
    %v640 = vmul.f32 %v638, %v619
    %vm641 = vcmp.gt.s32.totalorder %v74, 14
    %v642 = vsel %vm641, %v640, 0.0
    %v643 = vsub.f32 %v610, %v642
    %v644 = vlog2.pop %v643
    %v645 = vmul.f32 %v644, 0.6931472
    %v647 = vrot.slane %v645, 7
    %648 = vrot.lane.b32.xlu0 %v647, 113
    %v649 = vpop.permute.xlu0 %648
    %v651 = vadd.f32 %v618, %v649
    %vm652 = vcmask 0
    %653 = vst.msk [vmem:[#allocation2] sm:$0x1] %vm652, %v651
    // Predicated region
    $region6: #{tpu_custom_call.1} parent=1 // pred_check
      _
    $region7: #{tpu_custom_call.1} parent=1 // pred_check_branch
      %655 = sbr.rel (0) target = $region9
    $region8: #{tpu_custom_call.1} parent=1 // pred_region
      %657 = vsyncadd [#allocation3], 0
      %s659 = sshll.u32 [#allocation2], 4
      %s660 = int_to_ptr.vmem [resolvable:$true] %s659
      %s661 = sshll.u32 %s1, 4
      %s662 = int_to_ptr.hbm [resolvable:$true] %s661
      %664 = dma.vmem_to_hbm [thread:$0]  %s660, 16, %s662, [#allocation3]
    $region9: #{tpu_custom_call.1} parent=1 // pred_fallthru
      _
    // Predicated region
    $region10: #{tpu_custom_call.1} parent=1 // pred_check
      _
    $region11: #{tpu_custom_call.1} parent=1 // pred_check_branch
      %666 = sbr.rel (0) target = $region13
    $region12: #{tpu_custom_call.1} parent=1 // pred_region
      %668 = dma.done [#allocation3], 16
    $region13: #{tpu_custom_call.1} parent=1 // pred_fallthru
      _
    %669 = vsyncpa [#allocation3], 1

</llo_original>
